<compile_context>
chip_gen: v7x
topology: tpu7x:2x2x1
jax: 0.10.0
libtpu: 0.0.40
codegen_flags: <defaults>
</compile_context>

<pallas_src>
import functools

import jax
import jax.numpy as jnp
from jax.experimental import pallas as pl
from jax.experimental.pallas import tpu as pltpu


def fully_classifier_kernel(x_ref, w1_ref, b1_ref, w2_ref, b2_ref, o_ref, *,
                            chunk, n_chunks):
    # x_ref : (C_in, T)   pixel tile, pixels on the lane axis
    # w1_ref: (H, C_in)   b1_ref: (H, 1)
    # w2_ref: (1, H)      b2_ref: (1,) scalar in SMEM
    # o_ref : (1, T)      lane-dense output tile
    # The tile is processed in `chunk`-lane sub-chunks so the (H, chunk) f32
    # hidden temp stays small and does not dictate the DMA tile size.
    w1 = w1_ref[...]
    b1 = b1_ref[...]
    w2 = w2_ref[...]
    b2 = b2_ref[0]
    for c in range(n_chunks):                      # static, n_chunks <= 16
        sl = pl.ds(c * chunk, chunk)
        x = x_ref[:, sl]
        h = jnp.dot(w1, x, preferred_element_type=jnp.float32) + b1
        h = jnp.maximum(h, 0.0)                    # ReLU
        y = jnp.dot(w2, h, preferred_element_type=jnp.float32) + b2
        o_ref[:, sl] = jax.nn.sigmoid(y).astype(o_ref.dtype)   # Sigmoid


def _round_up(x, m):
    return ((x + m - 1) // m) * m


def _cdiv(a, b):
    return -(-a // b)


def _vmem_capacity_bytes():
    try:
        cap = int(getattr(pltpu.get_tpu_info(), "vmem_capacity_bytes"))
        if cap > 0:
            return cap
    except Exception:
        pass
    return 64 << 20    # conservative fallback (v7x has the smallest VMEM)


def _plan_tiles(hw, batch, c_in, itemsize, h_dim, *,
                chunk_cap=8192, abs_cap=131072, min_steps=8):
    """Pick (tile_hw, chunk, hw_padded, vmem_limit_bytes) from the VMEM budget."""
    phys = _vmem_capacity_bytes()
    budget = phys // 2                 # pipeline footprint <= half of physical VMEM

    # Per-lane VMEM cost: x tile (rows padded to 8 sublanes, double-buffered)
    # + out tile (1 row padded to 8 sublanes, double-buffered).
    per_lane = 2 * _round_up(max(c_in, 1), 8) * itemsize + 2 * 8 * itemsize
    # Fixed cost: (h_dim, chunk) f32 hidden temp + resident weights + slack.
    fixed = h_dim * chunk_cap * 4 + (1 << 20)

    cap = max(128, min(abs_cap, ((budget - fixed) // per_lane) // 128 * 128))

    hw128 = _round_up(hw, 128)
    tile = min(hw128, cap)

    # Keep >= min_steps total grid steps when the spatial extent allows it:
    # covers both v7x TensorCores and gives the pipeline something to overlap.
    while tile > 128 and batch * _cdiv(hw128, tile) < min_steps:
        tile = max(128, _round_up(tile // 2, 128))

    # Sub-chunk for the in-kernel compute loop; must divide the tile.
    if tile <= chunk_cap:
        chunk = tile
    else:
        chunk = chunk_cap
        tile = (tile // chunk) * chunk

    hw_padded = _cdiv(hw, tile) * tile

    footprint = per_lane * tile + h_dim * chunk * 4 + (64 << 10)
    vmem_limit = int(min(phys - (8 << 20),
                         max(footprint * 5 // 4 + (4 << 20), 32 << 20)))
    return tile, chunk, hw_padded, vmem_limit


def fully_classifier_forward(x_nchw, w1, b1, w2, b2, *, tile_hw=None, chunk=None):
    """x_nchw: (B, C_in, H, W).  w1: (h_dim, C_in), b1: (h_dim,),
    w2: (1, h_dim), b2: (1,).  Returns (B, 1, H, W)."""
    B, C_in, H, W = x_nchw.shape
    h_dim = w1.shape[0]
    HW = H * W
    itemsize = jnp.dtype(x_nchw.dtype).itemsize

    auto_tile, auto_chunk, hw_padded, vmem_limit = _plan_tiles(
        HW, B, C_in, itemsize, h_dim)
    if tile_hw is None:
        tile_hw, chunk = auto_tile, auto_chunk
    else:
        chunk = chunk or min(tile_hw, 8192)
        hw_padded = _cdiv(HW, tile_hw) * tile_hw
    n_chunks = tile_hw // chunk

    x3 = x_nchw.reshape(B, C_in, HW)               # free reshape, no transpose
    if hw_padded != HW:
        # Zero-pad the pixel axis to a whole number of tiles; padded lanes run
        # sigmoid on zeros (benign, no NaN source) and are sliced off below.
        x3 = jnp.pad(x3, ((0, 0), (0, 0), (0, hw_padded - HW)))

    b1_col = b1.reshape(h_dim, 1).astype(jnp.float32)
    b2_s = b2.reshape(1).astype(jnp.float32)

    grid = (B, hw_padded // tile_hw)
    kernel = functools.partial(fully_classifier_kernel,
                               chunk=chunk, n_chunks=n_chunks)

    cost = pl.CostEstimate(
        flops=2 * B * hw_padded * (C_in * h_dim + h_dim),
        transcendentals=B * hw_padded,
        bytes_accessed=B * hw_padded * (C_in + 1) * itemsize
        + (w1.size + b1.size + w2.size + b2.size) * 4,
    )

    out3 = pl.pallas_call(
        kernel,
        out_shape=jax.ShapeDtypeStruct((B, 1, hw_padded), x_nchw.dtype),
        grid=grid,
        in_specs=[
            # pixel tile: batch dim squeezed, pixels on lanes
            pl.BlockSpec((None, C_in, tile_hw), lambda b, t: (b, 0, t)),
            pl.BlockSpec((h_dim, C_in), lambda b, t: (0, 0)),   # conv1 weight
            pl.BlockSpec((h_dim, 1), lambda b, t: (0, 0)),      # conv1 bias (col)
            pl.BlockSpec((1, h_dim), lambda b, t: (0, 0)),      # conv2 weight (row)
            pl.BlockSpec(memory_space=pltpu.MemorySpace.SMEM),  # conv2 bias scalar
        ],
        out_specs=pl.BlockSpec((None, 1, tile_hw), lambda b, t: (b, 0, t)),
        compiler_params=pltpu.CompilerParams(
            dimension_semantics=("parallel", "parallel"),
            vmem_limit_bytes=vmem_limit),
        cost_estimate=cost,
    )(x3, w1, b1_col, w2, b2_s)

    if hw_padded != HW:
        out3 = out3[:, :, :HW]
    return out3.reshape(B, 1, H, W)


def _reference(x, w1, b1, w2, b2):
    B, C, H, W = x.shape
    x3 = x.reshape(B, C, H * W)
    h = jnp.maximum(jnp.einsum("hc,bcp->bhp", w1, x3) + b1[None, :, None], 0.0)
    y = jax.nn.sigmoid(jnp.einsum("oh,bhp->bop", w2, h) + b2[None, :, None])
    return y.reshape(B, 1, H, W)


if __name__ == "__main__":
    # Module config: in_chan=4, h_dim=32 (small); input (B=2, C=4, H=16, W=16)
    in_chan, h_dim = 4, 32
    B, Hs, Ws = 2, 16, 16

    key = jax.random.PRNGKey(0)
    kx, kw1, kb1, kw2, kb2, kx2 = jax.random.split(key, 6)

    x = jax.random.normal(kx, (B, in_chan, Hs, Ws), dtype=jnp.float32)

    # Parameters in PyTorch conv layout (squeezed 1x1 kernels):
    # conv1 weight (h_dim, in_chan), conv2 weight (1, h_dim)
    w1 = jax.random.normal(kw1, (h_dim, in_chan), dtype=jnp.float32) * 0.1
    b1 = jax.random.normal(kb1, (h_dim,), dtype=jnp.float32) * 0.1
    w2 = jax.random.normal(kw2, (1, h_dim), dtype=jnp.float32) * 0.1
    b2 = jax.random.normal(kb2, (1,), dtype=jnp.float32) * 0.1

    out = fully_classifier_forward(x, w1, b1, w2, b2)
    jax.block_until_ready(out)
    ref = _reference(x, w1, b1, w2, b2)
    assert out.shape == (B, 1, Hs, Ws)
    assert jnp.allclose(out, ref, atol=1e-5), "mismatch vs reference"

    # Robustness check: non-128-divisible spatial extent goes through the
    # zero-pad / slice path.
    x2 = jax.random.normal(kx2, (B, in_chan, 10, 10), dtype=jnp.float32)
    out2 = fully_classifier_forward(x2, w1, b1, w2, b2)
    jax.block_until_ready(out2)
    ref2 = _reference(x2, w1, b1, w2, b2)
    assert out2.shape == (B, 1, 10, 10)
    assert jnp.allclose(out2, ref2, atol=1e-5), "mismatch vs reference (padded)"

    print("KERNEL_OK")
</pallas_src>

<mosaic_0001>
module attributes {stable_mosaic.version = 11 : i64} {
  func.func @fully_classifier_kernel(%arg0: i32, %arg1: i32, %arg2: memref<1x4x128xf32, #tpu.memory_space<vmem>>, %arg3: memref<32x4xf32, #tpu.memory_space<vmem>>, %arg4: memref<32x1xf32, #tpu.memory_space<vmem>>, %arg5: memref<1x32xf32, #tpu.memory_space<vmem>>, %arg6: memref<1xf32, #tpu.memory_space<smem>>, %arg7: memref<1x1x128xf32, #tpu.memory_space<vmem>>) attributes {dimension_semantics = [#tpu.dimension_semantics<parallel>, #tpu.dimension_semantics<parallel>], iteration_bounds = array<i64: 2, 2>, scalar_prefetch = 0 : i64, scratch_operands = 0 : i64, tpu.core_type = #tpu.core_type<tc>, window_params = [{transform_indices = @transform_0, window_bounds = array<i64: 1, 4, 128>}, {pipeline_mode = #tpu.pipeline_mode<synchronous>, transform_indices = @transform_1, window_bounds = array<i64: 32, 4>}, {pipeline_mode = #tpu.pipeline_mode<synchronous>, transform_indices = @transform_2, window_bounds = array<i64: 32, 1>}, {pipeline_mode = #tpu.pipeline_mode<synchronous>, transform_indices = @transform_3, window_bounds = array<i64: 1, 32>}, {transform_indices = @transform_4, window_bounds = array<i64: 1>}, {transform_indices = @transform_5, window_bounds = array<i64: 1, 1, 128>}]} {
    %c0 = arith.constant 0 : index
    %c0_0 = arith.constant 0 : index
    %0 = vector.load %arg3[%c0, %c0_0] : memref<32x4xf32, #tpu.memory_space<vmem>>, vector<32x4xf32>
    %c0_1 = arith.constant 0 : index
    %c0_2 = arith.constant 0 : index
    %1 = vector.load %arg4[%c0_1, %c0_2] : memref<32x1xf32, #tpu.memory_space<vmem>>, vector<32x1xf32>
    %c0_3 = arith.constant 0 : index
    %c0_4 = arith.constant 0 : index
    %2 = vector.load %arg5[%c0_3, %c0_4] : memref<1x32xf32, #tpu.memory_space<vmem>>, vector<1x32xf32>
    %c0_5 = arith.constant 0 : index
    %3 = memref.load %arg6[%c0_5] : memref<1xf32, #tpu.memory_space<smem>>
    %c0_6 = arith.constant 0 : index
    %c0_7 = arith.constant 0 : index
    %c0_8 = arith.constant 0 : index
    %4 = vector.load %arg2[%c0_6, %c0_7, %c0_8] : memref<1x4x128xf32, #tpu.memory_space<vmem>>, vector<1x4x128xf32>
    %5 = vector.shape_cast %4 : vector<1x4x128xf32> to vector<4x128xf32>
    %cst = arith.constant dense<0.000000e+00> : vector<32x128xf32>
    %6 = tpu.matmul %0, %5, %cst {dimension_numbers = #tpu.dot_dimension_numbers<[1], [0], [0], [1], [0, 0, 1, 1], [], []>} : vector<32x4xf32>, vector<4x128xf32>, vector<32x128xf32> -> vector<32x128xf32>
    %7 = vector.broadcast %1 : vector<32x1xf32> to vector<32x128xf32>
    %8 = arith.addf %6, %7 : vector<32x128xf32>
    %cst_9 = arith.constant 0.000000e+00 : f32
    %9 = vector.broadcast %cst_9 : f32 to vector<32x128xf32>
    %10 = arith.maximumf %8, %9 : vector<32x128xf32>
    %cst_10 = arith.constant dense<0.000000e+00> : vector<1x128xf32>
    %11 = tpu.matmul %2, %10, %cst_10 {dimension_numbers = #tpu.dot_dimension_numbers<[1], [0], [0], [1], [0, 0, 1, 1], [], []>} : vector<1x32xf32>, vector<32x128xf32>, vector<1x128xf32> -> vector<1x128xf32>
    %12 = vector.broadcast %3 : f32 to vector<1x128xf32>
    %13 = arith.addf %11, %12 : vector<1x128xf32>
    %14 = arith.negf %13 : vector<1x128xf32>
    %15 = math.exp %14 : vector<1x128xf32>
    %cst_11 = arith.constant 1.000000e+00 : f32
    %16 = vector.broadcast %cst_11 : f32 to vector<1x128xf32>
    %17 = arith.addf %16, %15 : vector<1x128xf32>
    %18 = arith.divf %16, %17 : vector<1x128xf32>
    %c0_12 = arith.constant 0 : index
    %c0_13 = arith.constant 0 : index
    %c0_14 = arith.constant 0 : index
    %19 = vector.load %arg7[%c0_12, %c0_13, %c0_14] : memref<1x1x128xf32, #tpu.memory_space<vmem>>, vector<1x1x128xf32>
    %20 = vector.shape_cast %19 : vector<1x1x128xf32> to vector<1x128xf32>
    %21 = vector.shape_cast %18 : vector<1x128xf32> to vector<1x1x128xf32>
    tpu.vector_store %arg7[%c0_12, %c0_13, %c0_14], %21 {strides = array<i32>} : memref<1x1x128xf32, #tpu.memory_space<vmem>>, vector<1x1x128xf32>,
    return
  }
  func.func @transform_0(%arg0: i32, %arg1: i32) -> (i32, i32, i32) {
    %c0_i32 = arith.constant 0 : i32
    %c0_i32_0 = arith.constant 0 : i32
    return %arg0, %c0_i32, %arg1 : i32, i32, i32
  }
  func.func @transform_1(%arg0: i32, %arg1: i32) -> (i32, i32) {
    %c0_i32 = arith.constant 0 : i32
    %c0_i32_0 = arith.constant 0 : i32
    %c0_i32_1 = arith.constant 0 : i32
    return %c0_i32, %c0_i32_0 : i32, i32
  }
  func.func @transform_2(%arg0: i32, %arg1: i32) -> (i32, i32) {
    %c0_i32 = arith.constant 0 : i32
    %c0_i32_0 = arith.constant 0 : i32
    %c0_i32_1 = arith.constant 0 : i32
    return %c0_i32, %c0_i32_0 : i32, i32
  }
  func.func @transform_3(%arg0: i32, %arg1: i32) -> (i32, i32) {
    %c0_i32 = arith.constant 0 : i32
    %c0_i32_0 = arith.constant 0 : i32
    %c0_i32_1 = arith.constant 0 : i32
    return %c0_i32, %c0_i32_0 : i32, i32
  }
  func.func @transform_4(%arg0: i32, %arg1: i32) -> i32 {
    %c0_i32 = arith.constant 0 : i32
    %c0_i32_0 = arith.constant 0 : i32
    return %c0_i32 : i32
  }
  func.func @transform_5(%arg0: i32, %arg1: i32) -> (i32, i32, i32) {
    %c0_i32 = arith.constant 0 : i32
    %c0_i32_0 = arith.constant 0 : i32
    return %arg0, %c0_i32, %arg1 : i32, i32, i32
  }
}

</mosaic_0001>

<llo_original>
// kernel: tpu_custom_call.1
$region0: #{tpu_custom_call.1}
  #allocation0 [shape = 'u32[]', space=smem, size = 0x4, offset = 0x4, fixed_abs, tag = 'smem constant byte address 0x4 - core index']
  #allocation1 [shape = 'u32[144,128]{1,0:T(1,128)}', space=vmem, size = 0x12000, scoped, tag = 'internal scratch']
  #allocation2 [shape = 'f32[1]{0:T(128)S(6)}', space=smem, size = 0x200, scoped, tag = 'scoped memory for tpu_custom_call.1']
  %s0 = inlined_call_operand.vmem [shape: f32[2,4,256], index: 0, kind: input, shape index: {}]
  %s1 = inlined_call_operand.vmem [shape: f32[32,4], index: 1, kind: input, shape index: {}]
  %s2 = inlined_call_operand.vmem [shape: f32[32,1], index: 2, kind: input, shape index: {}]
  %s3 = inlined_call_operand.vmem [shape: f32[1,32], index: 3, kind: input, shape index: {}]
  %s4 = inlined_call_operand.<no memory space> [shape: f32[1], index: 4, kind: input, shape index: {}]
  %s5 = inlined_call_operand.hbm [shape: f32[2,1,256], index: 5, kind: output, shape index: {}]
  %s6 = sld [smem:[#allocation0]]
  $region53: #{tpu_custom_call.1} parent=0
    _
  %s8 = ssub.s32 1, %s6
  %s9 = scalar_select 0, %s8, %s6
  %10 = sst [smem:[#allocation2]] %s4
  $region1: #{tpu_custom_call.1} parent=0
    #allocation3 [shape = 'u8[1024]{0}', space=vmem, size = 0x400, scoped, tag = 'output window, operand 0']
    #allocation4 [shape = 's32[2]{0}', space=sflag, size = 0x8, scoped, tag = 'scoped memory for tpu_custom_call.1']
    %11 = vsyncpa [#allocation4], 0
    %s12 = scalar_lea.sflag [#allocation4], 1
    %13 = vsyncpa %s12, 0
    loop: start=0, step=1, limit=6
    $region2: #{tpu_custom_call.1} parent=1 // loop_pre_header
      _
    $region3: #{tpu_custom_call.1} parent=1 // loop_header
      %s15 = sphi 0, %s19
      %p16 = scmp.ge.s32.totalorder %s15, 6
      %s22 = sphi 0, %s34
      %s23 = sphi 0, %s30
      %s24 = sphi 0, %s22
      %s25 = sphi 0, %s23
      %s26 = sphi 0, %s24
      %s27 = sphi 0, %s25
      %s39 = sphi 0, %s41
      %s42 = sphi 0, %s39
      %s43 = sphi 0, %s42
      %s59 = sphi 0, %s43
      %s63 = sphi 0, %s63
      %s65 = sphi 0, %s63
      %s66 = sphi 0, %s65
      %s80 = sphi 0, %s66
      %s84 = sphi 0, %s84
      %s86 = sphi 0, %s84
      %s87 = sphi 0, %s86
      %s101 = sphi 0, %s87
      %s105 = sphi 0, %s105
      %s107 = sphi 0, %s105
      %s108 = sphi 0, %s107
      %s122 = sphi 0, %s108
      %s126 = sphi 0, %s126
      %s128 = sphi 0, %s126
      %s129 = sphi 0, %s128
      %s143 = sphi 0, %s129
      %s151 = sphi 0, %s153
      %s154 = sphi 0, %s151
      %s155 = sphi 0, %s154
      %s171 = sphi 0, %s155
    $region4: #{tpu_custom_call.1} parent=1 // loop_header_branch
      %18 = sbr.rel (%p16) target = $region8
    $region5: #{tpu_custom_call.1} parent=1 // loop_body
      %s20 = ssub.s32 %s15, 1
      %s21 = ssub.s32 %s15, 2
      %s28 = sadd.s32 1, %s23
      %p29 = scmp.ge.s32.totalorder %s28, 2
      %s30 = scalar_select %p29, 0, %s28
      %s31 = sadd.s32 1, %s22
      %s32 = scalar_select %p29, %s31, %s22
      %p33 = scmp.ge.s32.totalorder %s32, 2
      %s34 = scalar_select %p33, 0, %s32
      %s35 = ssub.s32 %s22, %s34
      %s36 = ssub.s32 %s23, %s30
      %s37 = sor.u32 %s35, %s36
      %p38 = scmp.eq.s32.totalorder %s37, 0
      %s40 = sadd.s32 %s39, 1
      %s41 = scalar_select %p38, %s39, %s40
      %p44 = pneg %p38
      %p45 = scmp.eq.s32.totalorder %s15, 3
      %p46 = por %p44, %p45
      %p47 = scmp.ne.s32.totalorder %s39, %s42
      %p48 = scmp.eq.s32.totalorder %s15, 0
      %p49 = por %p47, %p48
      %p50 = scmp.ne.s32.totalorder %s39, %s42
      %p51 = scmp.eq.s32.totalorder %s20, 3
      %p52 = por %p50, %p51
      %p53 = scmp.ne.s32.totalorder %s42, %s43
      %p54 = scmp.eq.s32.totalorder %s20, 0
      %p55 = por %p53, %p54
      %p56 = scmp.ne.s32.totalorder %s42, %s43
      %p57 = scmp.eq.s32.totalorder %s21, 3
      %p58 = por %p56, %p57
      %p60 = scmp.ne.s32.totalorder %s43, %s59
      %p61 = scmp.eq.s32.totalorder %s21, 0
      %p62 = por %p60, %p61
      %s64 = sadd.s32 %s63, 1
      %p67 = scmp.eq.s32.totalorder %s15, 3
      %p68 = scmp.ne.s32.totalorder %s63, %s65
      %p69 = scmp.eq.s32.totalorder %s15, 0
      %p70 = por %p68, %p69
      %p71 = scmp.ne.s32.totalorder %s63, %s65
      %p72 = scmp.eq.s32.totalorder %s20, 3
      %p73 = por %p71, %p72
      %p74 = scmp.ne.s32.totalorder %s65, %s66
      %p75 = scmp.eq.s32.totalorder %s20, 0
      %p76 = por %p74, %p75
      %p77 = scmp.ne.s32.totalorder %s65, %s66
      %p78 = scmp.eq.s32.totalorder %s21, 3
      %p79 = por %p77, %p78
      %p81 = scmp.ne.s32.totalorder %s66, %s80
      %p82 = scmp.eq.s32.totalorder %s21, 0
      %p83 = por %p81, %p82
      %s85 = sadd.s32 %s84, 1
      %p88 = scmp.eq.s32.totalorder %s15, 3
      %p89 = scmp.ne.s32.totalorder %s84, %s86
      %p90 = scmp.eq.s32.totalorder %s15, 0
      %p91 = por %p89, %p90
      %p92 = scmp.ne.s32.totalorder %s84, %s86
      %p93 = scmp.eq.s32.totalorder %s20, 3
      %p94 = por %p92, %p93
      %p95 = scmp.ne.s32.totalorder %s86, %s87
      %p96 = scmp.eq.s32.totalorder %s20, 0
      %p97 = por %p95, %p96
      %p98 = scmp.ne.s32.totalorder %s86, %s87
      %p99 = scmp.eq.s32.totalorder %s21, 3
      %p100 = por %p98, %p99
      %p102 = scmp.ne.s32.totalorder %s87, %s101
      %p103 = scmp.eq.s32.totalorder %s21, 0
      %p104 = por %p102, %p103
      %s106 = sadd.s32 %s105, 1
      %p109 = scmp.eq.s32.totalorder %s15, 3
      %p110 = scmp.ne.s32.totalorder %s105, %s107
      %p111 = scmp.eq.s32.totalorder %s15, 0
      %p112 = por %p110, %p111
      %p113 = scmp.ne.s32.totalorder %s105, %s107
      %p114 = scmp.eq.s32.totalorder %s20, 3
      %p115 = por %p113, %p114
      %p116 = scmp.ne.s32.totalorder %s107, %s108
      %p117 = scmp.eq.s32.totalorder %s20, 0
      %p118 = por %p116, %p117
      %p119 = scmp.ne.s32.totalorder %s107, %s108
      %p120 = scmp.eq.s32.totalorder %s21, 3
      %p121 = por %p119, %p120
      %p123 = scmp.ne.s32.totalorder %s108, %s122
      %p124 = scmp.eq.s32.totalorder %s21, 0
      %p125 = por %p123, %p124
      %s127 = sadd.s32 %s126, 1
      %p130 = scmp.eq.s32.totalorder %s15, 3
      %p131 = scmp.ne.s32.totalorder %s126, %s128
      %p132 = scmp.eq.s32.totalorder %s15, 0
      %p133 = por %p131, %p132
      %p134 = scmp.ne.s32.totalorder %s126, %s128
      %p135 = scmp.eq.s32.totalorder %s20, 3
      %p136 = por %p134, %p135
      %p137 = scmp.ne.s32.totalorder %s128, %s129
      %p138 = scmp.eq.s32.totalorder %s20, 0
      %p139 = por %p137, %p138
      %p140 = scmp.ne.s32.totalorder %s128, %s129
      %p141 = scmp.eq.s32.totalorder %s21, 3
      %p142 = por %p140, %p141
      %p144 = scmp.ne.s32.totalorder %s129, %s143
      %p145 = scmp.eq.s32.totalorder %s21, 0
      %p146 = por %p144, %p145
      %s147 = ssub.s32 %s22, %s34
      %s148 = ssub.s32 %s23, %s30
      %s149 = sor.u32 %s147, %s148
      %p150 = scmp.eq.s32.totalorder %s149, 0
      %s152 = sadd.s32 %s151, 1
      %s153 = scalar_select %p150, %s151, %s152
      %p156 = pneg %p150
      %p157 = scmp.eq.s32.totalorder %s15, 3
      %p158 = por %p156, %p157
      %p159 = scmp.ne.s32.totalorder %s151, %s154
      %p160 = scmp.eq.s32.totalorder %s15, 0
      %p161 = por %p159, %p160
      %p162 = scmp.ne.s32.totalorder %s151, %s154
      %p163 = scmp.eq.s32.totalorder %s20, 3
      %p164 = por %p162, %p163
      %p165 = scmp.ne.s32.totalorder %s154, %s155
      %p166 = scmp.eq.s32.totalorder %s20, 0
      %p167 = por %p165, %p166
      %p168 = scmp.ne.s32.totalorder %s154, %s155
      %p169 = scmp.eq.s32.totalorder %s21, 3
      %p170 = por %p168, %p169
      %p172 = scmp.ne.s32.totalorder %s155, %s171
      %p173 = scmp.eq.s32.totalorder %s21, 0
      %p174 = por %p172, %p173
      %p175 = scmp.le.s32.totalorder 1, %s15
      %p176 = scmp.lt.s32.totalorder %s15, 5
      %p177 = pnand %p175, %p176
      %p178 = pneg %p177
      // Predicated region
      $region9: #{tpu_custom_call.1} parent=5 // pred_check
        _
      $region10: #{tpu_custom_call.1} parent=5 // pred_check_branch
        %180 = sbr.rel (%p177) target = $region12
      $region11: #{tpu_custom_call.1} parent=5 // pred_region
        %s181 = ssub.s32 %s15, 1
        // Predicated region
        $region13: #{tpu_custom_call.1} parent=11 // pred_check
          %p182 = pneg %p76
        $region14: #{tpu_custom_call.1} parent=11 // pred_check_branch
          %184 = sbr.rel (%p182) target = $region16
        $region15: #{tpu_custom_call.1} parent=11 // pred_region
          _
        $region16: #{tpu_custom_call.1} parent=11 // pred_fallthru
          _
        // Predicated region
        $region17: #{tpu_custom_call.1} parent=11 // pred_check
          %p185 = pneg %p97
        $region18: #{tpu_custom_call.1} parent=11 // pred_check_branch
          %187 = sbr.rel (%p185) target = $region20
        $region19: #{tpu_custom_call.1} parent=11 // pred_region
          _
        $region20: #{tpu_custom_call.1} parent=11 // pred_fallthru
          _
        // Predicated region
        $region21: #{tpu_custom_call.1} parent=11 // pred_check
          %p188 = pneg %p118
        $region22: #{tpu_custom_call.1} parent=11 // pred_check_branch
          %190 = sbr.rel (%p188) target = $region24
        $region23: #{tpu_custom_call.1} parent=11 // pred_region
          _
        $region24: #{tpu_custom_call.1} parent=11 // pred_fallthru
          _
        // Predicated region
        $region25: #{tpu_custom_call.1} parent=11 // pred_check
          %p191 = pneg %p139
        $region26: #{tpu_custom_call.1} parent=11 // pred_check_branch
          %193 = sbr.rel (%p191) target = $region28
        $region27: #{tpu_custom_call.1} parent=11 // pred_region
          _
        $region28: #{tpu_custom_call.1} parent=11 // pred_fallthru
          _
      $region12: #{tpu_custom_call.1} parent=5 // pred_fallthru
        _
      %p194 = scmp.lt.s32.totalorder %s15, 4
      // Predicated region
      $region29: #{tpu_custom_call.1} parent=5 // pred_check
        %p195 = pneg %p194
      $region30: #{tpu_custom_call.1} parent=5 // pred_check_branch
        %197 = sbr.rel (%p195) target = $region32
      $region31: #{tpu_custom_call.1} parent=5 // pred_region
        // Predicated region
        $region33: #{tpu_custom_call.1} parent=31 // pred_check
          %p198 = pneg %p49
        $region34: #{tpu_custom_call.1} parent=31 // pred_check_branch
          %200 = sbr.rel (%p198) target = $region36
        $region35: #{tpu_custom_call.1} parent=31 // pred_region
          %p201 = scmp.lt.s32.totalorder %s22, 1
          %s202 = scalar_select %p201, %s22, 1
          %p203 = scmp.lt.s32.totalorder %s23, 1
          %s204 = scalar_select %p203, %s23, 1
          %s205 = smul.addr %s202, 2
          %s206 = sadd.s32 %s204, %s205
          %s207 = smul.addr %s206, 4
          %s208 = scalar_lea.vmem %s0, %s207
        $region36: #{tpu_custom_call.1} parent=31 // pred_fallthru
          _
      $region32: #{tpu_custom_call.1} parent=5 // pred_fallthru
        _
      %p209 = scmp.le.s32.totalorder 1, %s15
      %p210 = scmp.lt.s32.totalorder %s15, 5
      %p211 = pnand %p209, %p210
      %p212 = pneg %p211
      // Predicated region
      $region37: #{tpu_custom_call.1} parent=5 // pred_check
        _
      $region38: #{tpu_custom_call.1} parent=5 // pred_check_branch
        %214 = sbr.rel (%p211) target = $region40
      $region39: #{tpu_custom_call.1} parent=5 // pred_region
        %s215 = ssub.s32 %s15, 1
        %p216 = scmp.lt.s32.totalorder %s24, 1
        %s217 = scalar_select %p216, %s24, 1
        %p218 = scmp.lt.s32.totalorder %s25, 1
        %s219 = scalar_select %p218, %s25, 1
        %s220 = smul.addr %s217, 2
        %s221 = sadd.s32 %s219, %s220
        %s222 = smul.addr %s221, 4
        %s223 = scalar_lea.vmem %s0, %s222
        %p224 = pneg %p55
        %p225 = pneg %p52
        %p226 = pneg %p76
        %p227 = pneg %p73
        %p228 = pneg %p97
        %p229 = pneg %p94
        %p230 = pneg %p118
        %p231 = pneg %p115
        %p232 = pneg %p139
        %p233 = pneg %p136
        %p234 = pneg %p167
        %p235 = pneg %p164
        %s236 = sand.u32 %s154, 1
        %s237 = scalar_lea.sflag [#allocation4], %s236
        %s238 = sand.u32 %s154, 1
        %s239 = scalar_lea.vmem [#allocation3], %s238
        %p240 = scmp.lt.s32.totalorder %s24, 1
        %s241 = scalar_select %p240, %s24, 1
        %p242 = scmp.lt.s32.totalorder %s25, 1
        %s243 = scalar_select %p242, %s25, 1
        %s244 = smul.addr %s241, 2
        %s245 = sadd.s32 %s243, %s244
        %s246 = smul.addr %s245, 4
        %s247 = scalar_lea.vmem %s0, %s246
        %v248 = vld [vmem:[%s1] sm:$0xff]
        %v249 = vld [vmem:[%s1 + $0x8] sm:$0xff]
        %v250 = vld [vmem:[%s1 + $0x10] sm:$0xff]
        %v251 = vld [vmem:[%s1 + $0x18] sm:$0xff]
        %v252 = vld [vmem:[%s2] sm:$0xff]
        %v253 = vld [vmem:[%s2 + $0x8] sm:$0xff]
        %v254 = vld [vmem:[%s2 + $0x10] sm:$0xff]
        %v255 = vld [vmem:[%s2 + $0x18] sm:$0xff]
        %v256 = vld [vmem:[%s3] sm:$0x1]
        %s257 = sld [smem:[#allocation2]]
        %v258 = vld [vmem:[%s247] sm:$0xf]
        %260 = vset.pattern.permute.xlu0 0
        %261 = vperm.xlu0 %260, %v252
        %v262 = vpop.permute.xlu0 %261
        %265 = vset.pattern.permute.xlu0 0
        %266 = vperm.xlu0 %265, %v253
        %v267 = vpop.permute.xlu0 %266
        %270 = vset.pattern.permute.xlu0 0
        %271 = vperm.xlu0 %270, %v254
        %v272 = vpop.permute.xlu0 %271
        %275 = vset.pattern.permute.xlu0 0
        %276 = vperm.xlu0 %275, %v255
        %v277 = vpop.permute.xlu0 %276
        %vm279 = vcmask 31744
        %v281 = vsel %vm279, %v248, 0
        %v284 = vsel %vm279, %v249, 0
        %v287 = vsel %vm279, %v250, 0
        %v290 = vsel %vm279, %v251, 0
        %vm292 = vcmask 1043456
        %v294 = vsel %vm292, %v258, 0
        %296 = vmatprep.subr.mxu0 0.0
        %297 = vmatpush1.msra.mxu0 %v294
        %298 = vmatprep.subr.mxu0 0.0
        %299 = vmatpush1.msra.mxu0 0.0
        %300 = vmatprep.subr.mxu0 0.0
        %301 = vmatpush1.msra.mxu0 0.0
        %302 = vmatprep.subr.mxu0 0.0
        %303 = vmatpush1.msra.mxu0 0.0
        %304 = vmatprep.subr.mxu0 0.0
        %305 = vmatpush1.msra.mxu0 0.0
        %306 = vmatprep.subr.mxu0 0.0
        %307 = vmatpush1.msra.mxu0 0.0
        %308 = vmatprep.subr.mxu0 0.0
        %309 = vmatpush1.msra.mxu0 0.0
        %310 = vmatprep.subr.mxu0 0.0
        %311 = vmatpush1.msra.mxu0 0.0
        %312 = vmatprep.subr.mxu0 0.0
        %313 = vmatpush1.msra.mxu0 0.0
        %314 = vmatprep.subr.mxu0 0.0
        %315 = vmatpush1.msra.mxu0 0.0
        %316 = vmatprep.subr.mxu0 0.0
        %317 = vmatpush1.msra.mxu0 0.0
        %318 = vmatprep.subr.mxu0 0.0
        %319 = vmatpush1.msra.mxu0 0.0
        %320 = vmatprep.subr.mxu0 0.0
        %321 = vmatpush1.msra.mxu0 0.0
        %322 = vmatprep.subr.mxu0 0.0
        %323 = vmatpush1.msra.mxu0 0.0
        %324 = vmatprep.subr.mxu0 0.0
        %325 = vmatpush1.msra.mxu0 0.0
        %326 = vmatprep.subr.mxu0 0.0
        %327 = vmatpush1.msra.mxu0 0.0
        %328 = vmatprep.subr.mxu0 0.0
        %329 = vmatpush1.msra.mxu0 0.0
        %330 = vmatprep.subr.mxu0 0.0
        %331 = vmatpush1.msra.mxu0 0.0
        %332 = vmatprep.subr.mxu0 0.0
        %333 = vmatpush1.msra.mxu0 0.0
        %334 = vmatprep.subr.mxu0 0.0
        %335 = vmatpush1.msra.mxu0 0.0
        %336 = vmatprep.subr.mxu0 0.0
        %337 = vmatpush1.msra.mxu0 0.0
        %338 = vmatprep.subr.mxu0 0.0
        %339 = vmatpush1.msra.mxu0 0.0
        %340 = vmatprep.subr.mxu0 0.0
        %341 = vmatpush1.msra.mxu0 0.0
        %342 = vmatprep.subr.mxu0 0.0
        %343 = vmatpush1.msra.mxu0 0.0
        %344 = vmatprep.subr.mxu0 0.0
        %345 = vmatpush1.msra.mxu0 0.0
        %346 = vmatprep.subr.mxu0 0.0
        %347 = vmatpush1.msra.mxu0 0.0
        %348 = vmatprep.subr.mxu0 0.0
        %349 = vmatpush1.msra.mxu0 0.0
        %350 = vmatprep.subr.mxu0 0.0
        %351 = vmatpush1.msra.mxu0 0.0
        %352 = vmatprep.subr.mxu0 0.0
        %353 = vmatpush1.msra.mxu0 0.0
        %354 = vmatprep.subr.mxu0 0.0
        %355 = vmatpush1.msra.mxu0 0.0
        %356 = vmatprep.subr.mxu0 0.0
        %357 = vmatpush1.msra.mxu0 0.0
        %358 = vmatprep.subr.mxu0 0.0
        %359 = vmatpush1.msra.mxu0 0.0
        %360 = vmatprep.mubr.f32.mxu0 0.0
        %361 = vmatmul.mubr.f32.gmra.mrb[0].mxu0 %v281
        %v362 = vpop.f32.mrb[0].mxu0
        %v363 = vadd.f32 %v262, %v362
        %v364 = vpop.f32.mrb[0].mxu0
        %365 = vmatprep.mubr.f32.mxu0 0.0
        %366 = vmatmul.mubr.f32.gmra.mrb[0].mxu0 %v284
        %v367 = vpop.f32.mrb[0].mxu0
        %v368 = vadd.f32 %v267, %v367
        %v369 = vpop.f32.mrb[0].mxu0
        %370 = vmatprep.mubr.f32.mxu0 0.0
        %371 = vmatmul.mubr.f32.gmra.mrb[0].mxu0 %v287
        %v372 = vpop.f32.mrb[0].mxu0
        %v373 = vadd.f32 %v272, %v372
        %v374 = vpop.f32.mrb[0].mxu0
        %375 = vmatprep.mubr.f32.mxu0 0.0
        %376 = vmatmul.mubr.f32.gmra.mrb[0].mxu0 %v290
        %v377 = vpop.f32.mrb[0].mxu0
        %v378 = vadd.f32 %v277, %v377
        %v379 = vpop.f32.mrb[0].mxu0
        %380 = vdwg.mxu0
        %v381 = vmax.f32 %v363, 0.0
        %v382 = vmax.f32 %v368, 0.0
        %v383 = vmax.f32 %v373, 0.0
        %v384 = vmax.f32 %v378, 0.0
        %v385 = vstv %s257
        %vm386 = vcmask 261120
        %v388 = vsel %vm386, %v256, 0
        %390 = vmatprep.subr.mxu0 0.0
        %391 = vmatpush1.msra.mxu0 %v381
        %392 = vmatprep.subr.mxu0 0.0
        %393 = vmatpush1.msra.mxu0 %v382
        %394 = vmatprep.subr.mxu0 0.0
        %395 = vmatpush1.msra.mxu0 %v383
        %396 = vmatprep.subr.mxu0 0.0
        %397 = vmatpush1.msra.mxu0 %v384
        %398 = vmatprep.subr.mxu0 0.0
        %399 = vmatpush1.msra.mxu0 0.0
        %400 = vmatprep.subr.mxu0 0.0
        %401 = vmatpush1.msra.mxu0 0.0
        %402 = vmatprep.subr.mxu0 0.0
        %403 = vmatpush1.msra.mxu0 0.0
        %404 = vmatprep.subr.mxu0 0.0
        %405 = vmatpush1.msra.mxu0 0.0
        %406 = vmatprep.subr.mxu0 0.0
        %407 = vmatpush1.msra.mxu0 0.0
        %408 = vmatprep.subr.mxu0 0.0
        %409 = vmatpush1.msra.mxu0 0.0
        %410 = vmatprep.subr.mxu0 0.0
        %411 = vmatpush1.msra.mxu0 0.0
        %412 = vmatprep.subr.mxu0 0.0
        %413 = vmatpush1.msra.mxu0 0.0
        %414 = vmatprep.subr.mxu0 0.0
        %415 = vmatpush1.msra.mxu0 0.0
        %416 = vmatprep.subr.mxu0 0.0
        %417 = vmatpush1.msra.mxu0 0.0
        %418 = vmatprep.subr.mxu0 0.0
        %419 = vmatpush1.msra.mxu0 0.0
        %420 = vmatprep.subr.mxu0 0.0
        %421 = vmatpush1.msra.mxu0 0.0
        %422 = vmatprep.subr.mxu0 0.0
        %423 = vmatpush1.msra.mxu0 0.0
        %424 = vmatprep.subr.mxu0 0.0
        %425 = vmatpush1.msra.mxu0 0.0
        %426 = vmatprep.subr.mxu0 0.0
        %427 = vmatpush1.msra.mxu0 0.0
        %428 = vmatprep.subr.mxu0 0.0
        %429 = vmatpush1.msra.mxu0 0.0
        %430 = vmatprep.subr.mxu0 0.0
        %431 = vmatpush1.msra.mxu0 0.0
        %432 = vmatprep.subr.mxu0 0.0
        %433 = vmatpush1.msra.mxu0 0.0
        %434 = vmatprep.subr.mxu0 0.0
        %435 = vmatpush1.msra.mxu0 0.0
        %436 = vmatprep.subr.mxu0 0.0
        %437 = vmatpush1.msra.mxu0 0.0
        %438 = vmatprep.subr.mxu0 0.0
        %439 = vmatpush1.msra.mxu0 0.0
        %440 = vmatprep.subr.mxu0 0.0
        %441 = vmatpush1.msra.mxu0 0.0
        %442 = vmatprep.subr.mxu0 0.0
        %443 = vmatpush1.msra.mxu0 0.0
        %444 = vmatprep.subr.mxu0 0.0
        %445 = vmatpush1.msra.mxu0 0.0
        %446 = vmatprep.subr.mxu0 0.0
        %447 = vmatpush1.msra.mxu0 0.0
        %448 = vmatprep.subr.mxu0 0.0
        %449 = vmatpush1.msra.mxu0 0.0
        %450 = vmatprep.subr.mxu0 0.0
        %451 = vmatpush1.msra.mxu0 0.0
        %452 = vmatprep.subr.mxu0 0.0
        %453 = vmatpush1.msra.mxu0 0.0
        %454 = vmatprep.mubr.f32.mxu0 0.0
        %455 = vmatmul.mubr.f32.gmra.mrb[0].mxu0 %v388
        %v456 = vpop.f32.mrb[0].mxu0
        %v457 = vadd.f32 %v385, %v456
        %v458 = vpop.f32.mrb[0].mxu0
        %459 = vdwg.mxu0
        %v460 = vxor.u32 %v457, 2147483648
        %v461 = vmul.f32 %v460, 1.442695
        %v462 = vpow.pop %v461
        %v463 = vadd.f32 %v462, 1.0
        %v464 = vrcp.pop %v463
        %v465 = vmul.f32 1.0, %v464
        %466 = vst [vmem:[%s239] sm:$0x1] %v465
        %s467 = sand.u32 %s154, 1
        %s468 = scalar_lea.sflag [#allocation4], %s467
        %s469 = sand.u32 %s154, 1
        %s470 = scalar_lea.vmem [#allocation3], %s469
        // Predicated region
        $region41: #{tpu_custom_call.1} parent=39 // pred_check
          %p471 = pneg %p164
        $region42: #{tpu_custom_call.1} parent=39 // pred_check_branch
          %473 = sbr.rel (%p471) target = $region44
        $region43: #{tpu_custom_call.1} parent=39 // pred_region
          %s475 = ssub.s32 16, 16
          %476 = vsyncadd %s468, %s475
          %s477 = smul.addr %s24, 2
          %s478 = sadd.s32 %s25, %s477
          %s479 = smul.addr %s478, 16
          %s480 = scalar_lea.hbm %s5, %s479
          %s482 = sshll.u32 %s470, 4
          %s483 = int_to_ptr.vmem [resolvable:$true] %s482
          %485 = dma.vmem_to_hbm [thread:$0]  %s483, 16, %s480, %s468
        $region44: #{tpu_custom_call.1} parent=39 // pred_fallthru
          _
      $region40: #{tpu_custom_call.1} parent=5 // pred_fallthru
        _
      %p486 = scmp.le.s32.totalorder 2, %s15
      // Predicated region
      $region45: #{tpu_custom_call.1} parent=5 // pred_check
        %p487 = pneg %p486
      $region46: #{tpu_custom_call.1} parent=5 // pred_check_branch
        %489 = sbr.rel (%p487) target = $region48
      $region47: #{tpu_custom_call.1} parent=5 // pred_region
        %s490 = ssub.s32 %s15, 2
        // Predicated region
        $region49: #{tpu_custom_call.1} parent=47 // pred_check
          %p491 = pneg %p170
        $region50: #{tpu_custom_call.1} parent=47 // pred_check_branch
          %493 = sbr.rel (%p491) target = $region52
        $region51: #{tpu_custom_call.1} parent=47 // pred_region
          %s494 = sand.u32 %s155, 1
          %s495 = scalar_lea.sflag [#allocation4], %s494
          %s496 = sand.u32 %s155, 1
          %s497 = scalar_lea.vmem [#allocation3], %s496
          %498 = dma.done %s495, 16
        $region52: #{tpu_custom_call.1} parent=47 // pred_fallthru
          _
      $region48: #{tpu_custom_call.1} parent=5 // pred_fallthru
        _
    $region6: #{tpu_custom_call.1} parent=1 // loop_footer
      %s19 = sadd.s32 1, %s15
    $region7: #{tpu_custom_call.1} parent=1 // loop_footer_branch
      %14 = sbr.rel target = $region3
    $region8: #{tpu_custom_call.1} parent=1 // loop_exit
      _
    %499 = vsyncpa [#allocation4], 1
    %s500 = scalar_lea.sflag [#allocation4], 1
    %501 = vsyncpa %s500, 1

</llo_original>
